<compile_context>
chip_gen: v7x
topology: tpu7x:2x2x1
jax: 0.10.0
libtpu: 0.0.40
codegen_flags: <defaults>
</compile_context>

<pallas_src>
import jax
import jax.numpy as jnp
from jax.experimental import pallas as pl
from jax.experimental.pallas import tpu as pltpu


def _copy_kernel(x_ref, o_ref):
    # Straight copy of the current block (pure data movement).
    o_ref[...] = x_ref[...]


def _largest_lane_width(n, cap=2048):
    """Largest power-of-two multiple of 128 (<= cap) dividing n, else None."""
    lanes = cap
    while lanes >= 128:
        if n % lanes == 0:
            return lanes
        lanes //= 2
    return None


def _pallas_copy_2d(x2d, block_rows, block_cols):
    """Tiled HBM->VMEM->HBM copy of a 2D array (identity)."""
    rows, cols = x2d.shape
    nbytes = x2d.size * x2d.dtype.itemsize
    grid = (pl.cdiv(rows, block_rows), pl.cdiv(cols, block_cols))
    return pl.pallas_call(
        _copy_kernel,
        out_shape=jax.ShapeDtypeStruct((rows, cols), x2d.dtype),
        grid_spec=pltpu.PrefetchScalarGridSpec(
            num_scalar_prefetch=0,
            grid=grid,
            in_specs=[pl.BlockSpec((block_rows, block_cols), lambda i, j: (i, j))],
            out_specs=pl.BlockSpec((block_rows, block_cols), lambda i, j: (i, j)),
        ),
        compiler_params=pltpu.CompilerParams(
            dimension_semantics=("parallel", "parallel"),
        ),
        cost_estimate=pl.CostEstimate(
            flops=0, transcendentals=0, bytes_accessed=int(2 * nbytes)),
    )(x2d)


def my_flatten(x, *, target_block_bytes=2 << 20, max_lanes=2048):
    """Pallas equivalent of myFlatten.forward: (B, ...) -> (B, prod(rest))."""
    B = x.shape[0]
    F = 1
    for d in x.shape[1:]:
        F *= d
    N = B * F
    itemsize = x.dtype.itemsize

    lanes = _largest_lane_width(N, cap=max_lanes)

    if lanes is not None:
        # Lane-dense slab path: view the whole buffer as (rows, lanes) so every
        # block is wide (>=128 lanes) and sublane-full regardless of B.
        rows = N // lanes
        # Sublane packing: 8 rows/vreg for f32, 16 for bf16, 32 for int8.
        sub = max(8, 32 // itemsize)
        if rows <= sub:
            block_rows = rows  # full dim -> exempt from the (8,128) rule
        else:
            block_rows = max(
                sub, (target_block_bytes // (lanes * itemsize)) // sub * sub)
            block_rows = min(block_rows, (rows // sub) * sub)
        y2d = _pallas_copy_2d(x.reshape(rows, lanes), block_rows, lanes)
        return y2d.reshape(B, F)  # metadata-only, same row-major data

    # Fallback (total element count not a multiple of 128): tile the feature
    # axis directly; the batch axis stays full (exempt from the sublane rule).
    xf = x.reshape(B, F)
    if F < 128:
        block_cols = F  # full dim -> exempt from the (8,128) rule
    else:
        block_cols = (target_block_bytes // (B * itemsize)) // 128 * 128
        block_cols = max(128, min(block_cols, (F // 128) * 128))
    return _pallas_copy_2d(xf, B, block_cols)


if __name__ == "__main__":
    key = jax.random.PRNGKey(0)

    # Small NCHW input consistent with a conv-net feature map: (B, C, H, W)
    x = jax.random.normal(key, (2, 4, 16, 16), dtype=jnp.float32)
    y = my_flatten(x)
    jax.block_until_ready(y)
    y_ref = x.reshape(x.shape[0], -1)
    assert y.shape == (2, 4 * 16 * 16), y.shape
    assert jnp.array_equal(y, y_ref)

    # Fallback path: total size not a multiple of 128.
    x2 = jax.random.normal(jax.random.PRNGKey(0), (2, 3, 5, 7), dtype=jnp.float32)
    y2 = my_flatten(x2)
    jax.block_until_ready(y2)
    assert jnp.array_equal(y2, x2.reshape(2, -1))

    # Ragged / multi-step slab path with a packed dtype (bf16, 24 rows -> 16-row
    # blocks, masked last block).
    x3 = jax.random.normal(jax.random.PRNGKey(0), (4, 48, 16, 16)).astype(jnp.bfloat16)
    y3 = my_flatten(x3)
    jax.block_until_ready(y3)
    assert jnp.array_equal(y3, x3.reshape(4, -1))

    print("KERNEL_OK")
</pallas_src>

<mosaic_0001>
module attributes {stable_mosaic.version = 11 : i64} {
  func.func @_copy_kernel(%arg0: i32, %arg1: i32, %arg2: memref<1x2048xf32, #tpu.memory_space<vmem>>, %arg3: memref<1x2048xf32, #tpu.memory_space<vmem>>) attributes {dimension_semantics = [#tpu.dimension_semantics<parallel>, #tpu.dimension_semantics<parallel>], iteration_bounds = array<i64: 1, 1>, scalar_prefetch = 0 : i64, scratch_operands = 0 : i64, tpu.core_type = #tpu.core_type<tc>, window_params = [{transform_indices = @transform_0, window_bounds = array<i64: 1, 2048>}, {transform_indices = @transform_1, window_bounds = array<i64: 1, 2048>}]} {
    %c0 = arith.constant 0 : index
    %c0_0 = arith.constant 0 : index
    %0 = vector.load %arg2[%c0, %c0_0] : memref<1x2048xf32, #tpu.memory_space<vmem>>, vector<1x2048xf32>
    %c0_1 = arith.constant 0 : index
    %c0_2 = arith.constant 0 : index
    %1 = vector.load %arg3[%c0_1, %c0_2] : memref<1x2048xf32, #tpu.memory_space<vmem>>, vector<1x2048xf32>
    tpu.vector_store %arg3[%c0_1, %c0_2], %0 {strides = array<i32>} : memref<1x2048xf32, #tpu.memory_space<vmem>>, vector<1x2048xf32>,
    return
  }
  func.func @transform_0(%arg0: i32, %arg1: i32) -> (i32, i32) {
    %c0_i32 = arith.constant 0 : i32
    return %arg0, %arg1 : i32, i32
  }
  func.func @transform_1(%arg0: i32, %arg1: i32) -> (i32, i32) {
    %c0_i32 = arith.constant 0 : i32
    return %arg0, %arg1 : i32, i32
  }
}

</mosaic_0001>

<llo_original>
// kernel: tpu_custom_call.1
$region0: #{tpu_custom_call.1}
  #allocation0 [shape = 'u32[]', space=smem, size = 0x4, offset = 0x4, fixed_abs, tag = 'smem constant byte address 0x4 - core index']
  #allocation1 [shape = 'u32[144,128]{1,0:T(1,128)}', space=vmem, size = 0x12000, scoped, tag = 'internal scratch']
  %s0 = inlined_call_operand.hbm [shape: f32[1,2048], index: 0, kind: input, shape index: {}]
  %s1 = inlined_call_operand.hbm [shape: f32[1,2048], index: 1, kind: output, shape index: {}]
  %s2 = sld [smem:[#allocation0]]
  $region18: #{tpu_custom_call.1} parent=0
    _
  %s4 = ssub.s32 1, %s2
  %s5 = scalar_select 0, %s4, %s2
  $region1: #{tpu_custom_call.1} parent=0
    #allocation2 [shape = 'u8[8192]{0}', space=vmem, size = 0x2000, scoped, tag = 'input window, operand 0, single buffered']
    #allocation3 [shape = 's32[1]{0}', space=sflag, size = 0x4, scoped, tag = 'scoped memory for tpu_custom_call.1']
    #allocation4 [shape = 's32[1]{0}', space=sflag, size = 0x4, scoped, tag = 'scoped memory for tpu_custom_call.1']
    #allocation5 [shape = 'u8[8192]{0}', space=vmem, size = 0x2000, scoped, tag = 'output window, operand 0, single buffered']
    %6 = vsyncpa [#allocation3], 0
    %7 = vsyncpa [#allocation4], 0
    // Predicated region
    $region2: #{tpu_custom_call.1} parent=1 // pred_check
      _
    $region3: #{tpu_custom_call.1} parent=1 // pred_check_branch
      %9 = sbr.rel (0) target = $region5
    $region4: #{tpu_custom_call.1} parent=1 // pred_region
      %s11 = ssub.s32 256, 256
      %12 = vsyncadd [#allocation3], %s11
      %s14 = sshll.u32 [#allocation2], 4
      %s15 = int_to_ptr.vmem [resolvable:$true] %s14
      %17 = dma.hbm_to_vmem [thread:$0]  %s0, 256, %s15, [#allocation3]
    $region5: #{tpu_custom_call.1} parent=1 // pred_fallthru
      _
    // Predicated region
    $region6: #{tpu_custom_call.1} parent=1 // pred_check
      _
    $region7: #{tpu_custom_call.1} parent=1 // pred_check_branch
      %19 = sbr.rel (0) target = $region9
    $region8: #{tpu_custom_call.1} parent=1 // pred_region
      %20 = dma.done [#allocation3], 256
    $region9: #{tpu_custom_call.1} parent=1 // pred_fallthru
      _
    %v21 = vld [vmem:[#allocation2] sm:$0xff]
    %v22 = vld [vmem:[#allocation2 + $0x8] sm:$0xff]
    %23 = vst [vmem:[#allocation5] sm:$0xff] %v21
    %24 = vst [vmem:[#allocation5 + $0x8] sm:$0xff] %v22
    // Predicated region
    $region10: #{tpu_custom_call.1} parent=1 // pred_check
      _
    $region11: #{tpu_custom_call.1} parent=1 // pred_check_branch
      %26 = sbr.rel (0) target = $region13
    $region12: #{tpu_custom_call.1} parent=1 // pred_region
      %s28 = ssub.s32 256, 256
      %29 = vsyncadd [#allocation4], %s28
      %s31 = sshll.u32 [#allocation5], 4
      %s32 = int_to_ptr.vmem [resolvable:$true] %s31
      %34 = dma.vmem_to_hbm [thread:$0]  %s32, 256, %s1, [#allocation4]
    $region13: #{tpu_custom_call.1} parent=1 // pred_fallthru
      _
    // Predicated region
    $region14: #{tpu_custom_call.1} parent=1 // pred_check
      _
    $region15: #{tpu_custom_call.1} parent=1 // pred_check_branch
      %36 = sbr.rel (0) target = $region17
    $region16: #{tpu_custom_call.1} parent=1 // pred_region
      %37 = dma.done [#allocation4], 256
    $region17: #{tpu_custom_call.1} parent=1 // pred_fallthru
      _
    %38 = vsyncpa [#allocation3], 1
    %39 = vsyncpa [#allocation4], 1

</llo_original>
